<compile_context>
chip_gen: v7x
topology: tpu7x:2x2x1
jax: 0.10.0
libtpu: 0.0.40
codegen_flags: <defaults>
</compile_context>

<pallas_src>
import jax
import jax.numpy as jnp
from jax import lax
from jax.experimental import pallas as pl
from jax.experimental.pallas import tpu as pltpu

_EPS = 1e-5
_LANE = 128                      # TPU lane width: conv output channels padded to this
_VMEM_LIMIT = 48 * 1024 * 1024   # safe on v5e/v6e (128 MiB) and v7x (64 MiB)


def _ceil_to(x, m):
    return int(pl.cdiv(x, m) * m)


def _compiler_params():
    return pltpu.CompilerParams(
        dimension_semantics=("parallel",),
        vmem_limit_bytes=_VMEM_LIMIT,
    )


# --------------------------- Pallas kernels ---------------------------

def _conv_mm_kernel(p_ref, w_ref, b_ref, o_ref):
    """Fused conv-as-matmul + folded-BN bias + ReLU (one ConvBNAct)."""
    y = jnp.dot(p_ref[...], w_ref[...], preferred_element_type=jnp.float32)
    o_ref[...] = jnp.maximum(y + b_ref[...], 0.0).astype(o_ref.dtype)


def _conv_conv_kernel(p_ref, w3_ref, b3_ref, w4_ref, b4_ref, o_ref):
    """Fused stem3 (3x3 conv as matmul) + stem4 (1x1 conv), BN+ReLU on each."""
    y = jnp.dot(p_ref[...], w3_ref[...], preferred_element_type=jnp.float32)
    y = jnp.maximum(y + b3_ref[...], 0.0)
    z = jnp.dot(y, w4_ref[...], preferred_element_type=jnp.float32)
    o_ref[...] = jnp.maximum(z + b4_ref[...], 0.0).astype(o_ref.dtype)


def _maxpool_2x2_kernel(x_ref, o_ref):
    """MaxPool2d(k=2, s=1) on one already zero-padded image block."""
    x = x_ref[...]                                        # (1, Ho+1, Wo+1, C)
    a = jnp.maximum(x[:, :-1, :-1, :], x[:, :-1, 1:, :])
    b = jnp.maximum(x[:, 1:, :-1, :], x[:, 1:, 1:, :])
    o_ref[...] = jnp.maximum(a, b).astype(o_ref.dtype)


# --------------------------- glue helpers ---------------------------

def _im2col(x_nhwc, ksize, stride, pad):
    """(N,H,W,C) -> (N*Ho*Wo, k*k*C) patches; pad = ((top,bot),(left,right))."""
    n, h, w, c = x_nhwc.shape
    xp = jnp.pad(x_nhwc, ((0, 0), pad[0], pad[1], (0, 0)))
    hp = h + pad[0][0] + pad[0][1]
    wp_ = w + pad[1][0] + pad[1][1]
    ho = (hp - ksize) // stride + 1
    wo = (wp_ - ksize) // stride + 1
    cols = [xp[:, dy:dy + stride * ho:stride, dx:dx + stride * wo:stride, :]
            for dy in range(ksize) for dx in range(ksize)]
    patches = jnp.stack(cols, axis=3)                     # (N,Ho,Wo,k*k,C)
    return patches.reshape(n * ho * wo, ksize * ksize * c), (n, ho, wo)


def _pad_cout(w_flat, b):
    """Zero-pad folded (K, Cout) weight / bias to a lane-dense Cout (x128)."""
    k, c = w_flat.shape
    cpad = _ceil_to(c, _LANE)
    w_p = jnp.pad(w_flat, ((0, 0), (0, cpad - c)))
    b_p = jnp.pad(b, (0, cpad - c)).reshape(1, cpad)
    return w_p, b_p


def _row_tiling(rows, block_rows):
    tm = min(_ceil_to(block_rows, 8), _ceil_to(rows, 8))
    rows_pad = _ceil_to(rows, tm)
    return tm, rows_pad


# --------------------------- Pallas wrappers ---------------------------

def conv_bn_relu(x_nhwc, w_flat, b, *, ksize, stride, pad, block_rows=512):
    """ConvBNAct as one gridded Pallas kernel (im2col matmul + bias + ReLU).

    Returns NHWC with the channel dim zero-padded to a multiple of 128 (so the
    store is a full-lane vst); callers slice back to the natural width.
    """
    patches, (n, ho, wo) = _im2col(x_nhwc, ksize, stride, pad)
    rows, kdim = patches.shape
    w_p, b_p = _pad_cout(w_flat, b)
    cpad = w_p.shape[1]
    tm, rows_pad = _row_tiling(rows, block_rows)
    if rows_pad != rows:
        patches = jnp.pad(patches, ((0, rows_pad - rows), (0, 0)))
    out = pl.pallas_call(
        _conv_mm_kernel,
        out_shape=jax.ShapeDtypeStruct((rows_pad, cpad), jnp.float32),
        grid=(rows_pad // tm,),
        in_specs=[
            pl.BlockSpec((tm, kdim), lambda i: (i, 0)),      # row tile of patches
            pl.BlockSpec((kdim, cpad), lambda i: (0, 0)),    # weights: VMEM resident
            pl.BlockSpec((1, cpad), lambda i: (0, 0)),       # bias: VMEM resident
        ],
        out_specs=pl.BlockSpec((tm, cpad), lambda i: (i, 0)),
        compiler_params=_compiler_params(),
    )(patches, w_p, b_p)
    return out[:rows].reshape(n, ho, wo, cpad)


def conv3_conv4_fused(cat_nhwc, w3, b3, w4, b4, *, block_rows=512):
    """Fused stem3 (3x3, s2, p1) + stem4 (1x1) in a single gridded kernel."""
    patches, (n, ho, wo) = _im2col(cat_nhwc, 3, 2, ((1, 1), (1, 1)))
    rows, kdim = patches.shape
    w3p, b3p = _pad_cout(w3, b3)
    c3 = w3p.shape[1]
    w4p, b4p = _pad_cout(w4, b4)
    w4p = jnp.pad(w4p, ((0, c3 - w4p.shape[0]), (0, 0)))    # stem4 K = padded stem3 C
    c4 = w4p.shape[1]
    tm, rows_pad = _row_tiling(rows, block_rows)
    if rows_pad != rows:
        patches = jnp.pad(patches, ((0, rows_pad - rows), (0, 0)))
    out = pl.pallas_call(
        _conv_conv_kernel,
        out_shape=jax.ShapeDtypeStruct((rows_pad, c4), jnp.float32),
        grid=(rows_pad // tm,),
        in_specs=[
            pl.BlockSpec((tm, kdim), lambda i: (i, 0)),
            pl.BlockSpec((kdim, c3), lambda i: (0, 0)),
            pl.BlockSpec((1, c3), lambda i: (0, 0)),
            pl.BlockSpec((c3, c4), lambda i: (0, 0)),
            pl.BlockSpec((1, c4), lambda i: (0, 0)),
        ],
        out_specs=pl.BlockSpec((tm, c4), lambda i: (i, 0)),
        compiler_params=_compiler_params(),
    )(patches, w3p, b3p, w4p, b4p)
    return out[:rows].reshape(n, ho, wo, c4)


def maxpool_2x2_s1(xpad_nhwc):
    """MaxPool2d(kernel=2, stride=1) on an already right/bottom zero-padded NHWC
    tensor; one image per grid step, shifted-window max computed in-kernel."""
    n, hp, wp_, c = xpad_nhwc.shape
    ho, wo = hp - 1, wp_ - 1
    # TODO(synk): tile spatially with halo blocks for production-size feature maps.
    return pl.pallas_call(
        _maxpool_2x2_kernel,
        out_shape=jax.ShapeDtypeStruct((n, ho, wo, c), jnp.float32),
        grid=(n,),
        in_specs=[pl.BlockSpec((1, hp, wp_, c), lambda i: (i, 0, 0, 0))],
        out_specs=pl.BlockSpec((1, ho, wo, c), lambda i: (i, 0, 0, 0)),
        compiler_params=_compiler_params(),
    )(xpad_nhwc)


# --------------------------- parameter setup ---------------------------

def _fold_bn(w_flat, gamma, beta, mean, var):
    scale = gamma / jnp.sqrt(var + _EPS)
    return w_flat * scale[None, :], beta - mean * scale


def init_stem_block_params(key, in_chs, mid_chs, out_chs):
    def conv_bn(k, ksize, cin, cout):
        k1, k2, k3, k4, k5 = jax.random.split(k, 5)
        w = 0.1 * jax.random.normal(k1, (ksize, ksize, cin, cout), jnp.float32)
        gamma = 0.5 + jax.random.uniform(k2, (cout,), jnp.float32)
        beta = 0.1 * jax.random.normal(k3, (cout,), jnp.float32)
        mean = 0.05 * jax.random.normal(k4, (cout,), jnp.float32)
        var = 0.5 + jax.random.uniform(k5, (cout,), jnp.float32)
        # flat (k*k*cin, cout) matches the im2col tap ordering (dy, dx, cin)
        return _fold_bn(w.reshape(ksize * ksize * cin, cout), gamma, beta, mean, var)

    ks = jax.random.split(key, 5)
    return {
        "stem1": conv_bn(ks[0], 3, in_chs, mid_chs),
        "stem2a": conv_bn(ks[1], 2, mid_chs, mid_chs // 2),
        "stem2b": conv_bn(ks[2], 2, mid_chs // 2, mid_chs),
        "stem3": conv_bn(ks[3], 3, 2 * mid_chs, mid_chs),
        "stem4": conv_bn(ks[4], 1, mid_chs, out_chs),
    }


# --------------------------- StemBlock forward ---------------------------

def stem_block_forward(x_nchw, params, *, block_rows=512):
    """Pallas-backed StemBlock forward. Input/Output: NCHW (PyTorch convention)."""
    mid = params["stem2b"][0].shape[1]
    half = params["stem2a"][0].shape[1]
    out_chs = params["stem4"][0].shape[1]

    x = jnp.transpose(x_nchw, (0, 2, 3, 1))                        # NCHW -> NHWC

    # stem1: 3x3 / stride 2 / pad 1
    s1 = conv_bn_relu(x, *params["stem1"], ksize=3, stride=2,
                      pad=((1, 1), (1, 1)), block_rows=block_rows)
    s1n = s1[..., :mid]

    # F.pad(x, (0,1,0,1)) is folded into the im2col / pool spatial padding.
    s2a = conv_bn_relu(s1n, *params["stem2a"], ksize=2, stride=1,
                       pad=((0, 1), (0, 1)), block_rows=block_rows)
    s2b = conv_bn_relu(s2a[..., :half], *params["stem2b"], ksize=2, stride=1,
                       pad=((0, 1), (0, 1)), block_rows=block_rows)

    # pool branch: MaxPool2d(2, stride 1, ceil) over the zero-padded stem1 output
    # (kept at the lane-padded width so the pool kernel also stores full lanes).
    s1p = jnp.pad(s1, ((0, 0), (0, 1), (0, 1), (0, 0)))
    x1 = maxpool_2x2_s1(s1p)

    # channel concat (torch.cat(dim=1)) then fused stem3 + stem4 kernel
    cat = jnp.concatenate([x1[..., :mid], s2b[..., :mid]], axis=-1)
    y = conv3_conv4_fused(cat, params["stem3"][0], params["stem3"][1],
                          params["stem4"][0], params["stem4"][1],
                          block_rows=block_rows)
    # TODO(synk): use_lab=True (LearnableAffineBlock) variant not exercised
    #             (Identity for this config).
    return jnp.transpose(y[..., :out_chs], (0, 3, 1, 2))           # NHWC -> NCHW


# --------------------------- pure-JAX reference ---------------------------

def _ref_forward(x_nchw, params):
    def conv(x, wb, ksize, stride, padding):
        w_flat, b = wb
        cin = w_flat.shape[0] // (ksize * ksize)
        cout = w_flat.shape[1]
        w = w_flat.reshape(ksize, ksize, cin, cout)
        y = lax.conv_general_dilated(x, w, (stride, stride), padding,
                                     dimension_numbers=("NHWC", "HWIO", "NHWC"))
        return jnp.maximum(y + b[None, None, None, :], 0.0)

    x = jnp.transpose(x_nchw, (0, 2, 3, 1))
    x = conv(x, params["stem1"], 3, 2, ((1, 1), (1, 1)))
    xp = jnp.pad(x, ((0, 0), (0, 1), (0, 1), (0, 0)))
    x2 = conv(xp, params["stem2a"], 2, 1, ((0, 0), (0, 0)))
    x2p = jnp.pad(x2, ((0, 0), (0, 1), (0, 1), (0, 0)))
    x2 = conv(x2p, params["stem2b"], 2, 1, ((0, 0), (0, 0)))
    x1 = lax.reduce_window(xp, -jnp.inf, lax.max,
                           (1, 2, 2, 1), (1, 1, 1, 1), "VALID")
    x = jnp.concatenate([x1, x2], axis=-1)
    x = conv(x, params["stem3"], 3, 2, ((1, 1), (1, 1)))
    x = conv(x, params["stem4"], 1, 1, ((0, 0), (0, 0)))
    return jnp.transpose(x, (0, 3, 1, 2))


# --------------------------- main ---------------------------

if __name__ == "__main__":
    N, IN_CHS, MID_CHS, OUT_CHS, H, W = 2, 4, 16, 32, 16, 16

    key = jax.random.PRNGKey(0)
    kx, kp = jax.random.split(key)
    x = jax.random.normal(kx, (N, IN_CHS, H, W), jnp.float32)
    params = init_stem_block_params(kp, IN_CHS, MID_CHS, OUT_CHS)

    # block_rows=64 keeps the demo grids multi-step so the row pipeline is exercised.
    out = jax.block_until_ready(stem_block_forward(x, params, block_rows=64))
    ref = jax.block_until_ready(_ref_forward(x, params))

    assert out.shape == (N, OUT_CHS, H // 4, W // 4), out.shape
    max_err = float(jnp.max(jnp.abs(out - ref)))
    assert jnp.allclose(out, ref, rtol=1e-4, atol=1e-4), max_err
    print("KERNEL_OK")
</pallas_src>

<mosaic_0001>
module attributes {stable_mosaic.version = 11 : i64} {
  func.func @_conv_mm_kernel(%arg0: i32, %arg1: memref<64x36xf32, #tpu.memory_space<vmem>>, %arg2: memref<36x128xf32, #tpu.memory_space<vmem>>, %arg3: memref<1x128xf32, #tpu.memory_space<vmem>>, %arg4: memref<64x128xf32, #tpu.memory_space<vmem>>) attributes {dimension_semantics = [#tpu.dimension_semantics<parallel>], iteration_bounds = array<i64: 2>, scalar_prefetch = 0 : i64, scratch_operands = 0 : i64, tpu.core_type = #tpu.core_type<tc>, window_params = [{transform_indices = @transform_0, window_bounds = array<i64: 64, 36>}, {pipeline_mode = #tpu.pipeline_mode<synchronous>, transform_indices = @transform_1, window_bounds = array<i64: 36, 128>}, {pipeline_mode = #tpu.pipeline_mode<synchronous>, transform_indices = @transform_2, window_bounds = array<i64: 1, 128>}, {transform_indices = @transform_3, window_bounds = array<i64: 64, 128>}]} {
    %c0 = arith.constant 0 : index
    %c0_0 = arith.constant 0 : index
    %0 = vector.load %arg1[%c0, %c0_0] : memref<64x36xf32, #tpu.memory_space<vmem>>, vector<64x36xf32>
    %c0_1 = arith.constant 0 : index
    %c0_2 = arith.constant 0 : index
    %1 = vector.load %arg2[%c0_1, %c0_2] : memref<36x128xf32, #tpu.memory_space<vmem>>, vector<36x128xf32>
    %cst = arith.constant dense<0.000000e+00> : vector<64x128xf32>
    %2 = tpu.matmul %0, %1, %cst {dimension_numbers = #tpu.dot_dimension_numbers<[1], [0], [0], [1], [0, 0, 1, 1], [], []>} : vector<64x36xf32>, vector<36x128xf32>, vector<64x128xf32> -> vector<64x128xf32>
    %c0_3 = arith.constant 0 : index
    %c0_4 = arith.constant 0 : index
    %3 = vector.load %arg3[%c0_3, %c0_4] : memref<1x128xf32, #tpu.memory_space<vmem>>, vector<1x128xf32>
    %4 = vector.broadcast %3 : vector<1x128xf32> to vector<64x128xf32>
    %5 = arith.addf %2, %4 : vector<64x128xf32>
    %cst_5 = arith.constant 0.000000e+00 : f32
    %6 = vector.broadcast %cst_5 : f32 to vector<64x128xf32>
    %7 = arith.maximumf %5, %6 : vector<64x128xf32>
    %c0_6 = arith.constant 0 : index
    %c0_7 = arith.constant 0 : index
    %8 = vector.load %arg4[%c0_6, %c0_7] : memref<64x128xf32, #tpu.memory_space<vmem>>, vector<64x128xf32>
    tpu.vector_store %arg4[%c0_6, %c0_7], %7 {strides = array<i32>} : memref<64x128xf32, #tpu.memory_space<vmem>>, vector<64x128xf32>,
    return
  }
  func.func @transform_0(%arg0: i32) -> (i32, i32) {
    %c0_i32 = arith.constant 0 : i32
    %c0_i32_0 = arith.constant 0 : i32
    return %arg0, %c0_i32 : i32, i32
  }
  func.func @transform_1(%arg0: i32) -> (i32, i32) {
    %c0_i32 = arith.constant 0 : i32
    %c0_i32_0 = arith.constant 0 : i32
    %c0_i32_1 = arith.constant 0 : i32
    return %c0_i32, %c0_i32_0 : i32, i32
  }
  func.func @transform_2(%arg0: i32) -> (i32, i32) {
    %c0_i32 = arith.constant 0 : i32
    %c0_i32_0 = arith.constant 0 : i32
    %c0_i32_1 = arith.constant 0 : i32
    return %c0_i32, %c0_i32_0 : i32, i32
  }
  func.func @transform_3(%arg0: i32) -> (i32, i32) {
    %c0_i32 = arith.constant 0 : i32
    %c0_i32_0 = arith.constant 0 : i32
    return %arg0, %c0_i32 : i32, i32
  }
}

</mosaic_0001>

<llo_original>
// kernel: tpu_custom_call.1
$region0: #{tpu_custom_call.1}
  #allocation0 [shape = 'u32[]', space=smem, size = 0x4, offset = 0x4, fixed_abs, tag = 'smem constant byte address 0x4 - core index']
  #allocation1 [shape = 'u32[144,128]{1,0:T(1,128)}', space=vmem, size = 0x12000, scoped, tag = 'internal scratch']
  %s0 = inlined_call_operand.vmem [shape: f32[128,36], index: 0, kind: input, shape index: {}]
  %s1 = inlined_call_operand.vmem [shape: f32[36,128], index: 1, kind: input, shape index: {}]
  %s2 = inlined_call_operand.vmem [shape: f32[1,128], index: 2, kind: input, shape index: {}]
  %s3 = inlined_call_operand.hbm [shape: f32[128,128], index: 3, kind: output, shape index: {}]
  %s4 = sld [smem:[#allocation0]]
  $region45: #{tpu_custom_call.1} parent=0
    _
  %s6 = ssub.s32 1, %s4
  %s7 = scalar_select 0, %s6, %s4
  $region1: #{tpu_custom_call.1} parent=0
    #allocation2 [shape = 'u8[65536]{0}', space=vmem, size = 0x10000, scoped, tag = 'output window, operand 0']
    #allocation3 [shape = 's32[2]{0}', space=sflag, size = 0x8, scoped, tag = 'scoped memory for tpu_custom_call.1']
    %8 = vsyncpa [#allocation3], 0
    %s9 = scalar_lea.sflag [#allocation3], 1
    %10 = vsyncpa %s9, 0
    loop: start=0, step=1, limit=4
    $region2: #{tpu_custom_call.1} parent=1 // loop_pre_header
      _
    $region3: #{tpu_custom_call.1} parent=1 // loop_header
      %s12 = sphi 0, %s16
      %p13 = scmp.ge.s32.totalorder %s12, 4
      %s22 = sphi 0, %s24
      %s25 = sphi 0, %s22
      %s26 = sphi 0, %s25
      %s42 = sphi 0, %s26
      %s46 = sphi 0, %s46
      %s48 = sphi 0, %s46
      %s49 = sphi 0, %s48
      %s63 = sphi 0, %s49
      %s67 = sphi 0, %s67
      %s69 = sphi 0, %s67
      %s70 = sphi 0, %s69
      %s84 = sphi 0, %s70
      %s90 = sphi 0, %s92
      %s93 = sphi 0, %s90
      %s94 = sphi 0, %s93
      %s110 = sphi 0, %s94
    $region4: #{tpu_custom_call.1} parent=1 // loop_header_branch
      %15 = sbr.rel (%p13) target = $region8
    $region5: #{tpu_custom_call.1} parent=1 // loop_body
      %s17 = ssub.s32 %s12, 1
      %s18 = ssub.s32 %s12, 2
      %s19 = sadd.s32 %s12, 1
      %s20 = ssub.s32 %s12, %s19
      %p21 = scmp.eq.s32.totalorder %s20, 0
      %s23 = sadd.s32 %s22, 1
      %s24 = scalar_select %p21, %s22, %s23
      %p27 = pneg %p21
      %p28 = scmp.eq.s32.totalorder %s12, 1
      %p29 = por %p27, %p28
      %p30 = scmp.ne.s32.totalorder %s22, %s25
      %p31 = scmp.eq.s32.totalorder %s12, 0
      %p32 = por %p30, %p31
      %p33 = scmp.ne.s32.totalorder %s22, %s25
      %p34 = scmp.eq.s32.totalorder %s17, 1
      %p35 = por %p33, %p34
      %p36 = scmp.ne.s32.totalorder %s25, %s26
      %p37 = scmp.eq.s32.totalorder %s17, 0
      %p38 = por %p36, %p37
      %p39 = scmp.ne.s32.totalorder %s25, %s26
      %p40 = scmp.eq.s32.totalorder %s18, 1
      %p41 = por %p39, %p40
      %p43 = scmp.ne.s32.totalorder %s26, %s42
      %p44 = scmp.eq.s32.totalorder %s18, 0
      %p45 = por %p43, %p44
      %s47 = sadd.s32 %s46, 1
      %p50 = scmp.eq.s32.totalorder %s12, 1
      %p51 = scmp.ne.s32.totalorder %s46, %s48
      %p52 = scmp.eq.s32.totalorder %s12, 0
      %p53 = por %p51, %p52
      %p54 = scmp.ne.s32.totalorder %s46, %s48
      %p55 = scmp.eq.s32.totalorder %s17, 1
      %p56 = por %p54, %p55
      %p57 = scmp.ne.s32.totalorder %s48, %s49
      %p58 = scmp.eq.s32.totalorder %s17, 0
      %p59 = por %p57, %p58
      %p60 = scmp.ne.s32.totalorder %s48, %s49
      %p61 = scmp.eq.s32.totalorder %s18, 1
      %p62 = por %p60, %p61
      %p64 = scmp.ne.s32.totalorder %s49, %s63
      %p65 = scmp.eq.s32.totalorder %s18, 0
      %p66 = por %p64, %p65
      %s68 = sadd.s32 %s67, 1
      %p71 = scmp.eq.s32.totalorder %s12, 1
      %p72 = scmp.ne.s32.totalorder %s67, %s69
      %p73 = scmp.eq.s32.totalorder %s12, 0
      %p74 = por %p72, %p73
      %p75 = scmp.ne.s32.totalorder %s67, %s69
      %p76 = scmp.eq.s32.totalorder %s17, 1
      %p77 = por %p75, %p76
      %p78 = scmp.ne.s32.totalorder %s69, %s70
      %p79 = scmp.eq.s32.totalorder %s17, 0
      %p80 = por %p78, %p79
      %p81 = scmp.ne.s32.totalorder %s69, %s70
      %p82 = scmp.eq.s32.totalorder %s18, 1
      %p83 = por %p81, %p82
      %p85 = scmp.ne.s32.totalorder %s70, %s84
      %p86 = scmp.eq.s32.totalorder %s18, 0
      %p87 = por %p85, %p86
      %s88 = ssub.s32 %s12, %s19
      %p89 = scmp.eq.s32.totalorder %s88, 0
      %s91 = sadd.s32 %s90, 1
      %s92 = scalar_select %p89, %s90, %s91
      %p95 = pneg %p89
      %p96 = scmp.eq.s32.totalorder %s12, 1
      %p97 = por %p95, %p96
      %p98 = scmp.ne.s32.totalorder %s90, %s93
      %p99 = scmp.eq.s32.totalorder %s12, 0
      %p100 = por %p98, %p99
      %p101 = scmp.ne.s32.totalorder %s90, %s93
      %p102 = scmp.eq.s32.totalorder %s17, 1
      %p103 = por %p101, %p102
      %p104 = scmp.ne.s32.totalorder %s93, %s94
      %p105 = scmp.eq.s32.totalorder %s17, 0
      %p106 = por %p104, %p105
      %p107 = scmp.ne.s32.totalorder %s93, %s94
      %p108 = scmp.eq.s32.totalorder %s18, 1
      %p109 = por %p107, %p108
      %p111 = scmp.ne.s32.totalorder %s94, %s110
      %p112 = scmp.eq.s32.totalorder %s18, 0
      %p113 = por %p111, %p112
      %p114 = scmp.le.s32.totalorder 1, %s12
      %p115 = scmp.lt.s32.totalorder %s12, 3
      %p116 = pnand %p114, %p115
      %p117 = pneg %p116
      // Predicated region
      $region9: #{tpu_custom_call.1} parent=5 // pred_check
        _
      $region10: #{tpu_custom_call.1} parent=5 // pred_check_branch
        %119 = sbr.rel (%p116) target = $region12
      $region11: #{tpu_custom_call.1} parent=5 // pred_region
        %s120 = ssub.s32 %s12, 1
        // Predicated region
        $region13: #{tpu_custom_call.1} parent=11 // pred_check
          %p121 = pneg %p59
        $region14: #{tpu_custom_call.1} parent=11 // pred_check_branch
          %123 = sbr.rel (%p121) target = $region16
        $region15: #{tpu_custom_call.1} parent=11 // pred_region
          _
        $region16: #{tpu_custom_call.1} parent=11 // pred_fallthru
          _
        // Predicated region
        $region17: #{tpu_custom_call.1} parent=11 // pred_check
          %p124 = pneg %p80
        $region18: #{tpu_custom_call.1} parent=11 // pred_check_branch
          %126 = sbr.rel (%p124) target = $region20
        $region19: #{tpu_custom_call.1} parent=11 // pred_region
          _
        $region20: #{tpu_custom_call.1} parent=11 // pred_fallthru
          _
      $region12: #{tpu_custom_call.1} parent=5 // pred_fallthru
        _
      %p127 = scmp.lt.s32.totalorder %s12, 2
      // Predicated region
      $region21: #{tpu_custom_call.1} parent=5 // pred_check
        %p128 = pneg %p127
      $region22: #{tpu_custom_call.1} parent=5 // pred_check_branch
        %130 = sbr.rel (%p128) target = $region24
      $region23: #{tpu_custom_call.1} parent=5 // pred_region
        // Predicated region
        $region25: #{tpu_custom_call.1} parent=23 // pred_check
          %p131 = pneg %p32
        $region26: #{tpu_custom_call.1} parent=23 // pred_check_branch
          %133 = sbr.rel (%p131) target = $region28
        $region27: #{tpu_custom_call.1} parent=23 // pred_region
          %s134 = smul.u32 8, %s12
          %p135 = scmp.lt.s32.totalorder %s134, 15
          %s136 = scalar_select %p135, %s134, 15
          %s137 = smul.addr %s136, 8
          %s138 = scalar_lea.vmem %s0, %s137
          %s139 = smul.u32 8, %s12
        $region28: #{tpu_custom_call.1} parent=23 // pred_fallthru
          _
      $region24: #{tpu_custom_call.1} parent=5 // pred_fallthru
        _
      %p140 = scmp.le.s32.totalorder 1, %s12
      %p141 = scmp.lt.s32.totalorder %s12, 3
      %p142 = pnand %p140, %p141
      %p143 = pneg %p142
      // Predicated region
      $region29: #{tpu_custom_call.1} parent=5 // pred_check
        _
      $region30: #{tpu_custom_call.1} parent=5 // pred_check_branch
        %145 = sbr.rel (%p142) target = $region32
      $region31: #{tpu_custom_call.1} parent=5 // pred_region
        %s146 = ssub.s32 %s12, 1
        %s147 = smul.u32 8, %s17
        %p148 = scmp.lt.s32.totalorder %s147, 15
        %s149 = scalar_select %p148, %s147, 15
        %s150 = smul.addr %s149, 8
        %s151 = scalar_lea.vmem %s0, %s150
        %p152 = pneg %p38
        %p153 = pneg %p35
        %p154 = pneg %p59
        %p155 = pneg %p56
        %p156 = pneg %p80
        %p157 = pneg %p77
        %p158 = pneg %p106
        %p159 = pneg %p103
        %s160 = sand.u32 %s93, 1
        %s161 = scalar_lea.sflag [#allocation3], %s160
        %s162 = sand.u32 %s93, 1
        %s163 = smul.addr %s162, 64
        %s164 = scalar_lea.vmem [#allocation2], %s163
        %s165 = smul.u32 8, %s17
        %p166 = scmp.lt.s32.totalorder %s165, 15
        %s167 = scalar_select %p166, %s165, 15
        %s168 = smul.addr %s167, 8
        %s169 = scalar_lea.vmem %s0, %s168
        %s170 = smul.u32 8, %s17
        %s171 = smul.u32 8, %s17
        %v172 = vld [vmem:[%s169] sm:$0xff]
        %v173 = vld [vmem:[%s169 + $0x8] sm:$0xff]
        %v174 = vld [vmem:[%s169 + $0x10] sm:$0xff]
        %v175 = vld [vmem:[%s169 + $0x18] sm:$0xff]
        %v176 = vld [vmem:[%s169 + $0x20] sm:$0xff]
        %v177 = vld [vmem:[%s169 + $0x28] sm:$0xff]
        %v178 = vld [vmem:[%s169 + $0x30] sm:$0xff]
        %v179 = vld [vmem:[%s169 + $0x38] sm:$0xff]
        %v180 = vld [vmem:[%s1] sm:$0xff]
        %v181 = vld [vmem:[%s1 + $0x8] sm:$0xff]
        %v182 = vld [vmem:[%s1 + $0x10] sm:$0xff]
        %v183 = vld [vmem:[%s1 + $0x18] sm:$0xff]
        %v184 = vld [vmem:[%s1 + $0x20] sm:$0xf]
        %v185 = vld [vmem:[%s2] sm:$0x1]
        %v187 = vlaneseq
        %v188 = vshrl.u32 %v187, 7
        %v189 = vsub.s32 0, %v188
        %v190 = vrot.slane %v185, %v189
        %vm192 = vcmask 293888
        %v194 = vsel %vm192, %v172, 0
        %v197 = vsel %vm192, %v173, 0
        %v200 = vsel %vm192, %v174, 0
        %v203 = vsel %vm192, %v175, 0
        %v206 = vsel %vm192, %v176, 0
        %v209 = vsel %vm192, %v177, 0
        %v212 = vsel %vm192, %v178, 0
        %v215 = vsel %vm192, %v179, 0
        %vm217 = vcmask 1043456
        %v219 = vsel %vm217, %v184, 0
        %221 = vmatprep.subr.mxu0 0.0
        %222 = vmatpush1.msra.mxu0 %v180
        %223 = vmatprep.subr.mxu0 0.0
        %224 = vmatpush1.msra.mxu0 %v181
        %225 = vmatprep.subr.mxu0 0.0
        %226 = vmatpush1.msra.mxu0 %v182
        %227 = vmatprep.subr.mxu0 0.0
        %228 = vmatpush1.msra.mxu0 %v183
        %229 = vmatprep.subr.mxu0 0.0
        %230 = vmatpush1.msra.mxu0 %v219
        %231 = vmatprep.subr.mxu0 0.0
        %232 = vmatpush1.msra.mxu0 0.0
        %233 = vmatprep.subr.mxu0 0.0
        %234 = vmatpush1.msra.mxu0 0.0
        %235 = vmatprep.subr.mxu0 0.0
        %236 = vmatpush1.msra.mxu0 0.0
        %237 = vmatprep.subr.mxu0 0.0
        %238 = vmatpush1.msra.mxu0 0.0
        %239 = vmatprep.subr.mxu0 0.0
        %240 = vmatpush1.msra.mxu0 0.0
        %241 = vmatprep.subr.mxu0 0.0
        %242 = vmatpush1.msra.mxu0 0.0
        %243 = vmatprep.subr.mxu0 0.0
        %244 = vmatpush1.msra.mxu0 0.0
        %245 = vmatprep.subr.mxu0 0.0
        %246 = vmatpush1.msra.mxu0 0.0
        %247 = vmatprep.subr.mxu0 0.0
        %248 = vmatpush1.msra.mxu0 0.0
        %249 = vmatprep.subr.mxu0 0.0
        %250 = vmatpush1.msra.mxu0 0.0
        %251 = vmatprep.subr.mxu0 0.0
        %252 = vmatpush1.msra.mxu0 0.0
        %253 = vmatprep.subr.mxu0 0.0
        %254 = vmatpush1.msra.mxu0 0.0
        %255 = vmatprep.subr.mxu0 0.0
        %256 = vmatpush1.msra.mxu0 0.0
        %257 = vmatprep.subr.mxu0 0.0
        %258 = vmatpush1.msra.mxu0 0.0
        %259 = vmatprep.subr.mxu0 0.0
        %260 = vmatpush1.msra.mxu0 0.0
        %261 = vmatprep.subr.mxu0 0.0
        %262 = vmatpush1.msra.mxu0 0.0
        %263 = vmatprep.subr.mxu0 0.0
        %264 = vmatpush1.msra.mxu0 0.0
        %265 = vmatprep.subr.mxu0 0.0
        %266 = vmatpush1.msra.mxu0 0.0
        %267 = vmatprep.subr.mxu0 0.0
        %268 = vmatpush1.msra.mxu0 0.0
        %269 = vmatprep.subr.mxu0 0.0
        %270 = vmatpush1.msra.mxu0 0.0
        %271 = vmatprep.subr.mxu0 0.0
        %272 = vmatpush1.msra.mxu0 0.0
        %273 = vmatprep.subr.mxu0 0.0
        %274 = vmatpush1.msra.mxu0 0.0
        %275 = vmatprep.subr.mxu0 0.0
        %276 = vmatpush1.msra.mxu0 0.0
        %277 = vmatprep.subr.mxu0 0.0
        %278 = vmatpush1.msra.mxu0 0.0
        %279 = vmatprep.subr.mxu0 0.0
        %280 = vmatpush1.msra.mxu0 0.0
        %281 = vmatprep.subr.mxu0 0.0
        %282 = vmatpush1.msra.mxu0 0.0
        %283 = vmatprep.subr.mxu0 0.0
        %284 = vmatpush1.msra.mxu0 0.0
        %285 = vmatprep.mubr.f32.mxu0 0.0
        %286 = vmatmul.mubr.f32.gmra.mrb[0].mxu0 %v194
        %v287 = vpop.f32.mrb[0].mxu0
        %v288 = vadd.f32 %v190, %v287
        %v289 = vpop.f32.mrb[0].mxu0
        %290 = vmatprep.mubr.f32.mxu0 0.0
        %291 = vmatmul.mubr.f32.gmra.mrb[0].mxu0 %v197
        %v292 = vpop.f32.mrb[0].mxu0
        %v293 = vadd.f32 %v190, %v292
        %v294 = vpop.f32.mrb[0].mxu0
        %295 = vmatprep.mubr.f32.mxu0 0.0
        %296 = vmatmul.mubr.f32.gmra.mrb[0].mxu0 %v200
        %v297 = vpop.f32.mrb[0].mxu0
        %v298 = vadd.f32 %v190, %v297
        %v299 = vpop.f32.mrb[0].mxu0
        %300 = vmatprep.mubr.f32.mxu0 0.0
        %301 = vmatmul.mubr.f32.gmra.mrb[0].mxu0 %v203
        %v302 = vpop.f32.mrb[0].mxu0
        %v303 = vadd.f32 %v190, %v302
        %v304 = vpop.f32.mrb[0].mxu0
        %305 = vmatprep.mubr.f32.mxu0 0.0
        %306 = vmatmul.mubr.f32.gmra.mrb[0].mxu0 %v206
        %v307 = vpop.f32.mrb[0].mxu0
        %v308 = vadd.f32 %v190, %v307
        %v309 = vpop.f32.mrb[0].mxu0
        %310 = vmatprep.mubr.f32.mxu0 0.0
        %311 = vmatmul.mubr.f32.gmra.mrb[0].mxu0 %v209
        %v312 = vpop.f32.mrb[0].mxu0
        %v313 = vadd.f32 %v190, %v312
        %v314 = vpop.f32.mrb[0].mxu0
        %315 = vmatprep.mubr.f32.mxu0 0.0
        %316 = vmatmul.mubr.f32.gmra.mrb[0].mxu0 %v212
        %v317 = vpop.f32.mrb[0].mxu0
        %v318 = vadd.f32 %v190, %v317
        %v319 = vpop.f32.mrb[0].mxu0
        %320 = vmatprep.mubr.f32.mxu0 0.0
        %321 = vmatmul.mubr.f32.gmra.mrb[0].mxu0 %v215
        %v322 = vpop.f32.mrb[0].mxu0
        %v323 = vadd.f32 %v190, %v322
        %v324 = vpop.f32.mrb[0].mxu0
        %325 = vdwg.mxu0
        %v326 = vmax.f32 %v288, 0.0
        %v327 = vmax.f32 %v293, 0.0
        %v328 = vmax.f32 %v298, 0.0
        %v329 = vmax.f32 %v303, 0.0
        %v330 = vmax.f32 %v308, 0.0
        %v331 = vmax.f32 %v313, 0.0
        %v332 = vmax.f32 %v318, 0.0
        %v333 = vmax.f32 %v323, 0.0
        %334 = vst [vmem:[%s164] sm:$0xff] %v326
        %335 = vst [vmem:[%s164 + $0x8] sm:$0xff] %v327
        %336 = vst [vmem:[%s164 + $0x10] sm:$0xff] %v328
        %337 = vst [vmem:[%s164 + $0x18] sm:$0xff] %v329
        %338 = vst [vmem:[%s164 + $0x20] sm:$0xff] %v330
        %339 = vst [vmem:[%s164 + $0x28] sm:$0xff] %v331
        %340 = vst [vmem:[%s164 + $0x30] sm:$0xff] %v332
        %341 = vst [vmem:[%s164 + $0x38] sm:$0xff] %v333
        %s342 = sand.u32 %s93, 1
        %s343 = scalar_lea.sflag [#allocation3], %s342
        %s344 = sand.u32 %s93, 1
        %s345 = smul.addr %s344, 64
        %s346 = scalar_lea.vmem [#allocation2], %s345
        // Predicated region
        $region33: #{tpu_custom_call.1} parent=31 // pred_check
          %p347 = pneg %p103
        $region34: #{tpu_custom_call.1} parent=31 // pred_check_branch
          %349 = sbr.rel (%p347) target = $region36
        $region35: #{tpu_custom_call.1} parent=31 // pred_region
          %s350 = smul.u32 8, %s17
          %s352 = ssub.s32 1024, 1024
          %353 = vsyncadd %s343, %s352
          %s354 = smul.addr %s350, 128
          %s355 = scalar_lea.hbm %s3, %s354
          %s356 = sshll.u32 %s346, 4
          %s357 = int_to_ptr.vmem [resolvable:$true] %s356
          %362 = dma.vmem_to_hbm [thread:$0]  %s357, 1024, %s355, %s343, 128, 128, 8
        $region36: #{tpu_custom_call.1} parent=31 // pred_fallthru
          _
      $region32: #{tpu_custom_call.1} parent=5 // pred_fallthru
        _
      %p363 = scmp.le.s32.totalorder 2, %s12
      // Predicated region
      $region37: #{tpu_custom_call.1} parent=5 // pred_check
        %p364 = pneg %p363
      $region38: #{tpu_custom_call.1} parent=5 // pred_check_branch
        %366 = sbr.rel (%p364) target = $region40
      $region39: #{tpu_custom_call.1} parent=5 // pred_region
        %s367 = ssub.s32 %s12, 2
        // Predicated region
        $region41: #{tpu_custom_call.1} parent=39 // pred_check
          %p368 = pneg %p109
        $region42: #{tpu_custom_call.1} parent=39 // pred_check_branch
          %370 = sbr.rel (%p368) target = $region44
        $region43: #{tpu_custom_call.1} parent=39 // pred_region
          %s371 = sand.u32 %s94, 1
          %s372 = scalar_lea.sflag [#allocation3], %s371
          %s373 = sand.u32 %s94, 1
          %s374 = smul.addr %s373, 64
          %s375 = scalar_lea.vmem [#allocation2], %s374
          %376 = dma.done %s372, 1024
        $region44: #{tpu_custom_call.1} parent=39 // pred_fallthru
          _
      $region40: #{tpu_custom_call.1} parent=5 // pred_fallthru
        _
    $region6: #{tpu_custom_call.1} parent=1 // loop_footer
      %s16 = sadd.s32 1, %s12
    $region7: #{tpu_custom_call.1} parent=1 // loop_footer_branch
      %11 = sbr.rel target = $region3
    $region8: #{tpu_custom_call.1} parent=1 // loop_exit
      _
    %377 = vsyncpa [#allocation3], 1
    %s378 = scalar_lea.sflag [#allocation3], 1
    %379 = vsyncpa %s378, 1

</llo_original>
